<compile_context>
chip_gen: v6e
topology: v6e:2x2x1
jax: 0.10.0
libtpu: 0.0.40
codegen_flags: <defaults>
</compile_context>

<pallas_src>
import functools

import jax
import jax.numpy as jnp
import numpy as np
from jax.experimental import pallas as pl
from jax.experimental.pallas import tpu as pltpu

STATE_SIZE = 4
OBS_SIZE = 2
LANE = 128      # TPU vreg lane width
SUB = 8         # TPU vreg sublane count


class Args:
    dt = 0.1
    std_threshold = 1e-3       # eps
    corr_threshold = 1e-2      # eps_rho


def _model_constants(dt):
    # TODO(synk): the base class leaves F/Q/R/P0 abstract; deterministic
    # constant-velocity model constants are used for this instantiation.
    F = [[1.0, 0.0, dt, 0.0],
         [0.0, 1.0, 0.0, dt],
         [0.0, 0.0, 1.0, 0.0],
         [0.0, 0.0, 0.0, 1.0]]
    q = 0.5
    Q = [[q * dt ** 4 / 4, 0.0, q * dt ** 3 / 2, 0.0],
         [0.0, q * dt ** 4 / 4, 0.0, q * dt ** 3 / 2],
         [q * dt ** 3 / 2, 0.0, q * dt ** 2, 0.0],
         [0.0, q * dt ** 3 / 2, 0.0, q * dt ** 2]]
    Rdiag = [0.1, 0.1]
    P0 = [[1.0, 0.0, 0.0, 0.0],
          [0.0, 1.0, 0.0, 0.0],
          [0.0, 0.0, 10.0, 0.0],
          [0.0, 0.0, 0.0, 10.0]]
    return F, Q, Rdiag, P0


def _cdiv(a, b):
    return -(-a // b)


def _precompute_gains_and_stats(seq, num_points, args):
    """Run the covariance / gain recursion once at trace time (float64).

    Valid because F, Q, R, H, P0 are constant and the filter is linear, so the
    recursion is independent of the data and the batch.  Returns
      gains : tuple of per-step 4x2 Kalman gains (Python floats, baked in)
      stats : (T, 3) float64 table of [sigma_x, sigma_y, rho] after each step.
    NOTE: must not be applied to an EKF instantiation with state-dependent
    Jacobians.
    """
    F, Q, Rdiag, P0 = _model_constants(args.dt)
    F = np.asarray(F, np.float64)
    Q = np.asarray(Q, np.float64)
    R = np.diag(np.asarray(Rdiag, np.float64))
    P = np.asarray(P0, np.float64)
    H = np.concatenate(
        [np.eye(OBS_SIZE), np.zeros((OBS_SIZE, STATE_SIZE - OBS_SIZE))], axis=1)
    I = np.eye(STATE_SIZE)
    eps = float(args.std_threshold)
    eps_rho = float(args.corr_threshold)

    gains, stats = [], []
    for t in range(seq + num_points):
        P = F @ P @ F.T + Q                           # predict
        if t < seq:                                   # update (Joseph form)
            S = H @ P @ H.T + R
            K = P @ H.T @ np.linalg.inv(S)
            ImKH = I - K @ H
            P = ImKH @ P @ ImKH.T + K @ R @ K.T
            gains.append(tuple(tuple(float(v) for v in row) for row in K))
        sx = max(float(np.sqrt(P[0, 0])), eps)
        sy = max(float(np.sqrt(P[1, 1])), eps)
        rho = float(np.clip((P[0, 1] + P[1, 0]) / (2.0 * sx * sy),
                            eps_rho - 1.0, 1.0 - eps_rho))
        stats.append((sx, sy, rho))
    return tuple(gains), np.asarray(stats, np.float64)        # (T, 3)


def kalman_kernel(z_ref, out_ref, *, F, gains, seq, num_points, n_sub, sub):
    """State-only Kalman recursion over one (block_rows, 128) batch block.

    z_ref   : (seq, 2, block_rows, 128)            observations (x, y)
    out_ref : (seq+num_points, 2, block_rows, 128)  filtered/predicted (x, y)

    All covariance work is hoisted to trace time; the gains are compile-time
    constants, so each step is ~20 VPU ops per (8,128) sub-tile plus one
    coalesced (2, sub, 128) store.  Everything stays register-resident.
    """
    S = STATE_SIZE

    def mt(c, v):                       # constant * tile, skip structural 0/1
        if c == 0.0:
            return None
        if c == 1.0:
            return v
        return c * v

    def accum(terms):
        acc = None
        for t in terms:
            if t is None:
                continue
            acc = t if acc is None else acc + t
        return acc

    def predict(x):                     # X <- F X  (structural zeros skipped)
        return [accum([mt(F[i][k], x[k]) for k in range(S)]) for i in range(S)]

    # Static inner loop over 8-sublane sub-tiles: each carried quantity stays
    # a single vreg (carry = 4 tiles), so large batch blocks never spill.
    for g in range(n_sub):
        rs = g * sub
        if n_sub == 1:
            def zload(t):
                return z_ref[t]

            def ostore(t, v):
                out_ref[t] = v
        else:
            def zload(t, rs=rs):
                return z_ref[t, :, rs:rs + sub, :]

            def ostore(t, v, rs=rs):
                out_ref[t, :, rs:rs + sub, :] = v

        # ---- init: X = H^T Z_0  (positions from first obs, zero velocity) --
        z0 = zload(0)                                  # (2, sub, 128)
        zero = jnp.zeros_like(z0[0])
        x = [z0[0], z0[1], zero, zero]

        # ---- estimation phase: predict + gain-weighted update, record x/y --
        for t in range(seq):
            xp = predict(x)
            zt = z0 if t == 0 else zload(t)
            y0 = zt[0] - xp[0]
            y1 = zt[1] - xp[1]
            K = gains[t]
            x = [accum([xp[i], mt(K[i][0], y0), mt(K[i][1], y1)])
                 for i in range(S)]
            ostore(t, jnp.stack([x[0], x[1]], axis=0))

        # ---- prediction-only phase: predict, record x/y ---------------------
        for t in range(num_points):
            x = predict(x)
            ostore(seq + t, jnp.stack([x[0], x[1]], axis=0))


def _choose_blocking(batch, seq, T):
    """Pick (sublane rows per sub-tile, sub-tiles per block, padded #sub-tiles)."""
    n_rows = _cdiv(batch, LANE)                 # 128-lane rows of batch
    sub = min(SUB, n_rows)                      # <= 8 sublane rows per sub-tile
    n_groups = _cdiv(n_rows, sub)
    # Double-buffered VMEM bytes per sub-tile (z block in + x/y block out).
    per_group = 2 * (seq + T) * OBS_SIZE * sub * LANE * 4
    budget = 12 << 20     # conservative: fits default scoped VMEM on v5e/v6e/v7x
    gpb = int(max(1, min(budget // per_group, 8, n_groups)))
    if n_groups > 1:
        # keep >= 2 grid steps so v7x's second TensorCore gets work
        gpb = min(gpb, _cdiv(n_groups, 2))
    n_groups_pad = _cdiv(n_groups, gpb) * gpb
    return sub, gpb, n_groups_pad


def kalman_forward(inputs, num_points=30, *, args=Args()):
    """inputs: (seq, batch, obs_size) float32 — same convention as the PyTorch
    module.  Returns results: (seq + num_points, batch, 5) = [x, y, sx, sy, rho]."""
    seq, batch, obs = inputs.shape
    assert obs == OBS_SIZE
    T = seq + num_points

    F, _, _, _ = _model_constants(args.dt)
    gains, stats = _precompute_gains_and_stats(seq, num_points, args)

    sub, gpb, n_groups_pad = _choose_blocking(batch, seq, T)
    block_rows = gpb * sub
    n_rows_pad = n_groups_pad * sub
    b_pad = n_rows_pad * LANE

    # Lane-dense layout: (seq, obs, rows, 128).  One small pass over the input.
    z = jnp.transpose(inputs.astype(jnp.float32), (0, 2, 1))   # (seq, 2, B)
    z = jnp.pad(z, ((0, 0), (0, 0), (0, b_pad - batch)))
    z = z.reshape(seq, OBS_SIZE, n_rows_pad, LANE)

    kernel = functools.partial(
        kalman_kernel,
        F=tuple(tuple(float(v) for v in row) for row in F),
        gains=gains, seq=seq, num_points=num_points, n_sub=gpb, sub=sub)

    out = pl.pallas_call(
        kernel,
        out_shape=jax.ShapeDtypeStruct((T, OBS_SIZE, n_rows_pad, LANE),
                                       jnp.float32),
        grid_spec=pltpu.PrefetchScalarGridSpec(
            num_scalar_prefetch=0,
            grid=(n_groups_pad // gpb,),                 # batch-row blocks only
            in_specs=[pl.BlockSpec((seq, OBS_SIZE, block_rows, LANE),
                                   lambda c: (0, 0, c, 0))],
            out_specs=pl.BlockSpec((T, OBS_SIZE, block_rows, LANE),
                                   lambda c: (0, 0, c, 0)),
        ),
        compiler_params=pltpu.CompilerParams(
            dimension_semantics=("parallel",)),   # shard batch blocks over TCs
    )(z)

    # Assemble the module's (T, batch, 5) output.  sigma_x/sigma_y/rho are
    # batch-independent and come straight from the trace-time table.
    # TODO(synk): a consumer that accepts the kernel-native (T, 2, rows, 128)
    # layout plus the (T, 3) constant table could skip this final HBM pass.
    xy = out.reshape(T, OBS_SIZE, b_pad)[:, :, :batch]          # (T, 2, batch)
    xy = jnp.transpose(xy, (0, 2, 1))                           # (T, batch, 2)
    const = jnp.broadcast_to(
        jnp.asarray(stats, jnp.float32)[:, None, :], (T, batch, 3))
    return jnp.concatenate([xy, const], axis=-1)                # (T, batch, 5)


def kalman_reference(inputs_np, num_points, args):
    """Plain numpy (float64) reference mirroring the PyTorch forward."""
    seq, batch, obs = inputs_np.shape
    F, Q, Rdiag, P0 = _model_constants(args.dt)
    F = np.asarray(F)
    Q = np.asarray(Q)
    R = np.diag(Rdiag)
    P0 = np.asarray(P0)
    H = np.concatenate([np.eye(obs), np.zeros((obs, STATE_SIZE - obs))], axis=1)

    X = H.T @ inputs_np[0][..., None]                           # (batch, 4, 1)
    P = np.broadcast_to(P0, (batch, STATE_SIZE, STATE_SIZE)).copy()
    results = []

    def record(X, P):
        sx = np.maximum(np.sqrt(P[:, 0, 0]), args.std_threshold)[:, None]
        sy = np.maximum(np.sqrt(P[:, 1, 1]), args.std_threshold)[:, None]
        rho = np.clip((P[:, 0, 1] + P[:, 1, 0])[:, None] / (2 * sx * sy),
                      args.corr_threshold - 1.0, 1.0 - args.corr_threshold)
        results.append(np.concatenate([X[:, :2, 0], sx, sy, rho], axis=1))

    for t in range(seq + num_points):
        P = F @ P @ F.T + Q
        X = F @ X
        if t < seq:
            Z = inputs_np[t][..., None]
            Y = Z - H @ X
            S = H @ P @ H.T + R
            K = P @ H.T @ np.linalg.inv(S)
            X = X + K @ Y
            ImKH = np.eye(STATE_SIZE) - K @ H
            P = (ImKH @ P @ np.transpose(ImKH, (0, 2, 1))
                 + K @ R @ np.transpose(K, (0, 2, 1)))
        record(X, P)
    return np.stack(results)   # (T, batch, 5)


if __name__ == "__main__":
    args = Args()
    key0, key1 = jax.random.split(jax.random.PRNGKey(0))

    # Case 1: small batch — single grid step, sub-vreg batch tile.
    seq, batch, num_points = 8, 8, 6
    inputs = jax.random.normal(key0, (seq, batch, OBS_SIZE), dtype=jnp.float32)
    out = jax.block_until_ready(
        kalman_forward(inputs, num_points=num_points, args=args))
    assert out.shape == (seq + num_points, batch, 5)
    ref = kalman_reference(np.asarray(inputs, dtype=np.float64), num_points, args)
    np.testing.assert_allclose(np.asarray(out), ref, rtol=1e-4, atol=1e-4)

    # Case 2: larger batch — exercises multiple grid steps ("parallel" blocks)
    # and the inner 8-sublane sub-tile loop inside each block.
    seq2, batch2, num_points2 = 8, 4096, 6
    inputs2 = jax.random.normal(key1, (seq2, batch2, OBS_SIZE), dtype=jnp.float32)
    out2 = jax.block_until_ready(
        kalman_forward(inputs2, num_points=num_points2, args=args))
    assert out2.shape == (seq2 + num_points2, batch2, 5)
    ref2 = kalman_reference(np.asarray(inputs2, dtype=np.float64),
                            num_points2, args)
    np.testing.assert_allclose(np.asarray(out2), ref2, rtol=1e-4, atol=1e-4)

    print("KERNEL_OK")
</pallas_src>

<mosaic_0001>
module attributes {stable_mosaic.version = 11 : i64} {
  func.func @kalman_kernel(%arg0: i32, %arg1: memref<8x2x1x128xf32, #tpu.memory_space<vmem>>, %arg2: memref<14x2x1x128xf32, #tpu.memory_space<vmem>>) attributes {dimension_semantics = [#tpu.dimension_semantics<parallel>], iteration_bounds = array<i64: 1>, scalar_prefetch = 0 : i64, scratch_operands = 0 : i64, tpu.core_type = #tpu.core_type<tc>, window_params = [{transform_indices = @transform_0, window_bounds = array<i64: 8, 2, 1, 128>}, {transform_indices = @transform_1, window_bounds = array<i64: 14, 2, 1, 128>}]} {
    %c0 = arith.constant 0 : index
    %c0_0 = arith.constant 0 : index
    %c0_1 = arith.constant 0 : index
    %c0_2 = arith.constant 0 : index
    %0 = vector.load %arg1[%c0, %c0_0, %c0_1, %c0_2] : memref<8x2x1x128xf32, #tpu.memory_space<vmem>>, vector<1x2x1x128xf32>
    %1 = vector.shape_cast %0 : vector<1x2x1x128xf32> to vector<2x1x128xf32>
    %cst = arith.constant 0.000000e+00 : f32
    %2 = vector.broadcast %cst : f32 to vector<1x128xf32>
    %3 = vector.extract_strided_slice %1 {offsets = [0, 0, 0], sizes = [1, 1, 128], strides = [1, 1, 1]} : vector<2x1x128xf32> to vector<1x1x128xf32>
    %4 = vector.shape_cast %3 : vector<1x1x128xf32> to vector<1x128xf32>
    %5 = vector.extract_strided_slice %1 {offsets = [1, 0, 0], sizes = [1, 1, 128], strides = [1, 1, 1]} : vector<2x1x128xf32> to vector<1x1x128xf32>
    %6 = vector.shape_cast %5 : vector<1x1x128xf32> to vector<1x128xf32>
    %cst_3 = arith.constant 1.000000e-01 : f32
    %7 = vector.broadcast %cst_3 : f32 to vector<1x128xf32>
    %8 = arith.mulf %7, %2 : vector<1x128xf32>
    %9 = arith.addf %4, %8 : vector<1x128xf32>
    %cst_4 = arith.constant 1.000000e-01 : f32
    %10 = vector.broadcast %cst_4 : f32 to vector<1x128xf32>
    %11 = arith.mulf %10, %2 : vector<1x128xf32>
    %12 = arith.addf %6, %11 : vector<1x128xf32>
    %13 = vector.extract_strided_slice %1 {offsets = [0, 0, 0], sizes = [1, 1, 128], strides = [1, 1, 1]} : vector<2x1x128xf32> to vector<1x1x128xf32>
    %14 = vector.shape_cast %13 : vector<1x1x128xf32> to vector<1x128xf32>
    %15 = arith.subf %14, %9 : vector<1x128xf32>
    %16 = vector.extract_strided_slice %1 {offsets = [1, 0, 0], sizes = [1, 1, 128], strides = [1, 1, 1]} : vector<2x1x128xf32> to vector<1x1x128xf32>
    %17 = vector.shape_cast %16 : vector<1x1x128xf32> to vector<1x128xf32>
    %18 = arith.subf %17, %12 : vector<1x128xf32>
    %cst_5 = arith.constant 0.91666752 : f32
    %19 = vector.broadcast %cst_5 : f32 to vector<1x128xf32>
    %20 = arith.mulf %19, %15 : vector<1x128xf32>
    %21 = arith.addf %9, %20 : vector<1x128xf32>
    %cst_6 = arith.constant 0.91666752 : f32
    %22 = vector.broadcast %cst_6 : f32 to vector<1x128xf32>
    %23 = arith.mulf %22, %18 : vector<1x128xf32>
    %24 = arith.addf %12, %23 : vector<1x128xf32>
    %cst_7 = arith.constant 0.833532989 : f32
    %25 = vector.broadcast %cst_7 : f32 to vector<1x128xf32>
    %26 = arith.mulf %25, %15 : vector<1x128xf32>
    %27 = arith.addf %2, %26 : vector<1x128xf32>
    %cst_8 = arith.constant 0.833532989 : f32
    %28 = vector.broadcast %cst_8 : f32 to vector<1x128xf32>
    %29 = arith.mulf %28, %18 : vector<1x128xf32>
    %30 = arith.addf %2, %29 : vector<1x128xf32>
    %31 = vector.shape_cast %21 : vector<1x128xf32> to vector<1x1x128xf32>
    %32 = vector.shape_cast %24 : vector<1x128xf32> to vector<1x1x128xf32>
    %33 = tpu.concatenate %31, %32 in 0 : vector<1x1x128xf32>, vector<1x1x128xf32> -> vector<2x1x128xf32>
    %c0_9 = arith.constant 0 : index
    %c0_10 = arith.constant 0 : index
    %c0_11 = arith.constant 0 : index
    %c0_12 = arith.constant 0 : index
    %34 = vector.load %arg2[%c0_9, %c0_10, %c0_11, %c0_12] : memref<14x2x1x128xf32, #tpu.memory_space<vmem>>, vector<1x2x1x128xf32>
    %35 = vector.shape_cast %34 : vector<1x2x1x128xf32> to vector<2x1x128xf32>
    %36 = vector.shape_cast %33 : vector<2x1x128xf32> to vector<1x2x1x128xf32>
    tpu.vector_store %arg2[%c0_9, %c0_10, %c0_11, %c0_12], %36 {strides = array<i32>} : memref<14x2x1x128xf32, #tpu.memory_space<vmem>>, vector<1x2x1x128xf32>,
    %cst_13 = arith.constant 1.000000e-01 : f32
    %37 = vector.broadcast %cst_13 : f32 to vector<1x128xf32>
    %38 = arith.mulf %37, %27 : vector<1x128xf32>
    %39 = arith.addf %21, %38 : vector<1x128xf32>
    %cst_14 = arith.constant 1.000000e-01 : f32
    %40 = vector.broadcast %cst_14 : f32 to vector<1x128xf32>
    %41 = arith.mulf %40, %30 : vector<1x128xf32>
    %42 = arith.addf %24, %41 : vector<1x128xf32>
    %c1 = arith.constant 1 : index
    %c0_15 = arith.constant 0 : index
    %c0_16 = arith.constant 0 : index
    %c0_17 = arith.constant 0 : index
    %43 = vector.load %arg1[%c1, %c0_15, %c0_16, %c0_17] : memref<8x2x1x128xf32, #tpu.memory_space<vmem>>, vector<1x2x1x128xf32>
    %44 = vector.shape_cast %43 : vector<1x2x1x128xf32> to vector<2x1x128xf32>
    %45 = vector.extract_strided_slice %44 {offsets = [0, 0, 0], sizes = [1, 1, 128], strides = [1, 1, 1]} : vector<2x1x128xf32> to vector<1x1x128xf32>
    %46 = vector.shape_cast %45 : vector<1x1x128xf32> to vector<1x128xf32>
    %47 = arith.subf %46, %39 : vector<1x128xf32>
    %48 = vector.extract_strided_slice %44 {offsets = [1, 0, 0], sizes = [1, 1, 128], strides = [1, 1, 1]} : vector<2x1x128xf32> to vector<1x1x128xf32>
    %49 = vector.shape_cast %48 : vector<1x1x128xf32> to vector<1x128xf32>
    %50 = arith.subf %49, %42 : vector<1x128xf32>
    %cst_18 = arith.constant 0.666736066 : f32
    %51 = vector.broadcast %cst_18 : f32 to vector<1x128xf32>
    %52 = arith.mulf %51, %47 : vector<1x128xf32>
    %53 = arith.addf %39, %52 : vector<1x128xf32>
    %cst_19 = arith.constant 0.666736066 : f32
    %54 = vector.broadcast %cst_19 : f32 to vector<1x128xf32>
    %55 = arith.mulf %54, %50 : vector<1x128xf32>
    %56 = arith.addf %42, %55 : vector<1x128xf32>
    %cst_20 = arith.constant 3.33506918 : f32
    %57 = vector.broadcast %cst_20 : f32 to vector<1x128xf32>
    %58 = arith.mulf %57, %47 : vector<1x128xf32>
    %59 = arith.addf %27, %58 : vector<1x128xf32>
    %cst_21 = arith.constant 3.33506918 : f32
    %60 = vector.broadcast %cst_21 : f32 to vector<1x128xf32>
    %61 = arith.mulf %60, %50 : vector<1x128xf32>
    %62 = arith.addf %30, %61 : vector<1x128xf32>
    %63 = vector.shape_cast %53 : vector<1x128xf32> to vector<1x1x128xf32>
    %64 = vector.shape_cast %56 : vector<1x128xf32> to vector<1x1x128xf32>
    %65 = tpu.concatenate %63, %64 in 0 : vector<1x1x128xf32>, vector<1x1x128xf32> -> vector<2x1x128xf32>
    %c1_22 = arith.constant 1 : index
    %c0_23 = arith.constant 0 : index
    %c0_24 = arith.constant 0 : index
    %c0_25 = arith.constant 0 : index
    %66 = vector.load %arg2[%c1_22, %c0_23, %c0_24, %c0_25] : memref<14x2x1x128xf32, #tpu.memory_space<vmem>>, vector<1x2x1x128xf32>
    %67 = vector.shape_cast %66 : vector<1x2x1x128xf32> to vector<2x1x128xf32>
    %68 = vector.shape_cast %65 : vector<2x1x128xf32> to vector<1x2x1x128xf32>
    tpu.vector_store %arg2[%c1_22, %c0_23, %c0_24, %c0_25], %68 {strides = array<i32>} : memref<14x2x1x128xf32, #tpu.memory_space<vmem>>, vector<1x2x1x128xf32>,
    %cst_26 = arith.constant 1.000000e-01 : f32
    %69 = vector.broadcast %cst_26 : f32 to vector<1x128xf32>
    %70 = arith.mulf %69, %59 : vector<1x128xf32>
    %71 = arith.addf %53, %70 : vector<1x128xf32>
    %cst_27 = arith.constant 1.000000e-01 : f32
    %72 = vector.broadcast %cst_27 : f32 to vector<1x128xf32>
    %73 = arith.mulf %72, %62 : vector<1x128xf32>
    %74 = arith.addf %56, %73 : vector<1x128xf32>
    %c2 = arith.constant 2 : index
    %c0_28 = arith.constant 0 : index
    %c0_29 = arith.constant 0 : index
    %c0_30 = arith.constant 0 : index
    %75 = vector.load %arg1[%c2, %c0_28, %c0_29, %c0_30] : memref<8x2x1x128xf32, #tpu.memory_space<vmem>>, vector<1x2x1x128xf32>
    %76 = vector.shape_cast %75 : vector<1x2x1x128xf32> to vector<2x1x128xf32>
    %77 = vector.extract_strided_slice %76 {offsets = [0, 0, 0], sizes = [1, 1, 128], strides = [1, 1, 1]} : vector<2x1x128xf32> to vector<1x1x128xf32>
    %78 = vector.shape_cast %77 : vector<1x1x128xf32> to vector<1x128xf32>
    %79 = arith.subf %78, %71 : vector<1x128xf32>
    %80 = vector.extract_strided_slice %76 {offsets = [1, 0, 0], sizes = [1, 1, 128], strides = [1, 1, 1]} : vector<2x1x128xf32> to vector<1x1x128xf32>
    %81 = vector.shape_cast %80 : vector<1x1x128xf32> to vector<1x128xf32>
    %82 = arith.subf %81, %74 : vector<1x128xf32>
    %cst_31 = arith.constant 0.657270252 : f32
    %83 = vector.broadcast %cst_31 : f32 to vector<1x128xf32>
    %84 = arith.mulf %83, %79 : vector<1x128xf32>
    %85 = arith.addf %71, %84 : vector<1x128xf32>
    %cst_32 = arith.constant 0.657270252 : f32
    %86 = vector.broadcast %cst_32 : f32 to vector<1x128xf32>
    %87 = arith.mulf %86, %82 : vector<1x128xf32>
    %88 = arith.addf %74, %87 : vector<1x128xf32>
    %cst_33 = arith.constant 3.14500022 : f32
    %89 = vector.broadcast %cst_33 : f32 to vector<1x128xf32>
    %90 = arith.mulf %89, %79 : vector<1x128xf32>
    %91 = arith.addf %59, %90 : vector<1x128xf32>
    %cst_34 = arith.constant 3.14500022 : f32
    %92 = vector.broadcast %cst_34 : f32 to vector<1x128xf32>
    %93 = arith.mulf %92, %82 : vector<1x128xf32>
    %94 = arith.addf %62, %93 : vector<1x128xf32>
    %95 = vector.shape_cast %85 : vector<1x128xf32> to vector<1x1x128xf32>
    %96 = vector.shape_cast %88 : vector<1x128xf32> to vector<1x1x128xf32>
    %97 = tpu.concatenate %95, %96 in 0 : vector<1x1x128xf32>, vector<1x1x128xf32> -> vector<2x1x128xf32>
    %c2_35 = arith.constant 2 : index
    %c0_36 = arith.constant 0 : index
    %c0_37 = arith.constant 0 : index
    %c0_38 = arith.constant 0 : index
    %98 = vector.load %arg2[%c2_35, %c0_36, %c0_37, %c0_38] : memref<14x2x1x128xf32, #tpu.memory_space<vmem>>, vector<1x2x1x128xf32>
    %99 = vector.shape_cast %98 : vector<1x2x1x128xf32> to vector<2x1x128xf32>
    %100 = vector.shape_cast %97 : vector<2x1x128xf32> to vector<1x2x1x128xf32>
    tpu.vector_store %arg2[%c2_35, %c0_36, %c0_37, %c0_38], %100 {strides = array<i32>} : memref<14x2x1x128xf32, #tpu.memory_space<vmem>>, vector<1x2x1x128xf32>,
    %cst_39 = arith.constant 1.000000e-01 : f32
    %101 = vector.broadcast %cst_39 : f32 to vector<1x128xf32>
    %102 = arith.mulf %101, %91 : vector<1x128xf32>
    %103 = arith.addf %85, %102 : vector<1x128xf32>
    %cst_40 = arith.constant 1.000000e-01 : f32
    %104 = vector.broadcast %cst_40 : f32 to vector<1x128xf32>
    %105 = arith.mulf %104, %94 : vector<1x128xf32>
    %106 = arith.addf %88, %105 : vector<1x128xf32>
    %c3 = arith.constant 3 : index
    %c0_41 = arith.constant 0 : index
    %c0_42 = arith.constant 0 : index
    %c0_43 = arith.constant 0 : index
    %107 = vector.load %arg1[%c3, %c0_41, %c0_42, %c0_43] : memref<8x2x1x128xf32, #tpu.memory_space<vmem>>, vector<1x2x1x128xf32>
    %108 = vector.shape_cast %107 : vector<1x2x1x128xf32> to vector<2x1x128xf32>
    %109 = vector.extract_strided_slice %108 {offsets = [0, 0, 0], sizes = [1, 1, 128], strides = [1, 1, 1]} : vector<2x1x128xf32> to vector<1x1x128xf32>
    %110 = vector.shape_cast %109 : vector<1x1x128xf32> to vector<1x128xf32>
    %111 = arith.subf %110, %103 : vector<1x128xf32>
    %112 = vector.extract_strided_slice %108 {offsets = [1, 0, 0], sizes = [1, 1, 128], strides = [1, 1, 1]} : vector<2x1x128xf32> to vector<1x1x128xf32>
    %113 = vector.shape_cast %112 : vector<1x1x128xf32> to vector<1x128xf32>
    %114 = arith.subf %113, %106 : vector<1x128xf32>
    %cst_44 = arith.constant 0.612729669 : f32
    %115 = vector.broadcast %cst_44 : f32 to vector<1x128xf32>
    %116 = arith.mulf %115, %111 : vector<1x128xf32>
    %117 = arith.addf %103, %116 : vector<1x128xf32>
    %cst_45 = arith.constant 0.612729669 : f32
    %118 = vector.broadcast %cst_45 : f32 to vector<1x128xf32>
    %119 = arith.mulf %118, %114 : vector<1x128xf32>
    %120 = arith.addf %106, %119 : vector<1x128xf32>
    %cst_46 = arith.constant 2.36440277 : f32
    %121 = vector.broadcast %cst_46 : f32 to vector<1x128xf32>
    %122 = arith.mulf %121, %111 : vector<1x128xf32>
    %123 = arith.addf %91, %122 : vector<1x128xf32>
    %cst_47 = arith.constant 2.36440277 : f32
    %124 = vector.broadcast %cst_47 : f32 to vector<1x128xf32>
    %125 = arith.mulf %124, %114 : vector<1x128xf32>
    %126 = arith.addf %94, %125 : vector<1x128xf32>
    %127 = vector.shape_cast %117 : vector<1x128xf32> to vector<1x1x128xf32>
    %128 = vector.shape_cast %120 : vector<1x128xf32> to vector<1x1x128xf32>
    %129 = tpu.concatenate %127, %128 in 0 : vector<1x1x128xf32>, vector<1x1x128xf32> -> vector<2x1x128xf32>
    %c3_48 = arith.constant 3 : index
    %c0_49 = arith.constant 0 : index
    %c0_50 = arith.constant 0 : index
    %c0_51 = arith.constant 0 : index
    %130 = vector.load %arg2[%c3_48, %c0_49, %c0_50, %c0_51] : memref<14x2x1x128xf32, #tpu.memory_space<vmem>>, vector<1x2x1x128xf32>
    %131 = vector.shape_cast %130 : vector<1x2x1x128xf32> to vector<2x1x128xf32>
    %132 = vector.shape_cast %129 : vector<2x1x128xf32> to vector<1x2x1x128xf32>
    tpu.vector_store %arg2[%c3_48, %c0_49, %c0_50, %c0_51], %132 {strides = array<i32>} : memref<14x2x1x128xf32, #tpu.memory_space<vmem>>, vector<1x2x1x128xf32>,
    %cst_52 = arith.constant 1.000000e-01 : f32
    %133 = vector.broadcast %cst_52 : f32 to vector<1x128xf32>
    %134 = arith.mulf %133, %123 : vector<1x128xf32>
    %135 = arith.addf %117, %134 : vector<1x128xf32>
    %cst_53 = arith.constant 1.000000e-01 : f32
    %136 = vector.broadcast %cst_53 : f32 to vector<1x128xf32>
    %137 = arith.mulf %136, %126 : vector<1x128xf32>
    %138 = arith.addf %120, %137 : vector<1x128xf32>
    %c4 = arith.constant 4 : index
    %c0_54 = arith.constant 0 : index
    %c0_55 = arith.constant 0 : index
    %c0_56 = arith.constant 0 : index
    %139 = vector.load %arg1[%c4, %c0_54, %c0_55, %c0_56] : memref<8x2x1x128xf32, #tpu.memory_space<vmem>>, vector<1x2x1x128xf32>
    %140 = vector.shape_cast %139 : vector<1x2x1x128xf32> to vector<2x1x128xf32>
    %141 = vector.extract_strided_slice %140 {offsets = [0, 0, 0], sizes = [1, 1, 128], strides = [1, 1, 1]} : vector<2x1x128xf32> to vector<1x1x128xf32>
    %142 = vector.shape_cast %141 : vector<1x1x128xf32> to vector<1x128xf32>
    %143 = arith.subf %142, %135 : vector<1x128xf32>
    %144 = vector.extract_strided_slice %140 {offsets = [1, 0, 0], sizes = [1, 1, 128], strides = [1, 1, 1]} : vector<2x1x128xf32> to vector<1x1x128xf32>
    %145 = vector.shape_cast %144 : vector<1x1x128xf32> to vector<1x128xf32>
    %146 = arith.subf %145, %138 : vector<1x128xf32>
    %cst_57 = arith.constant 0.553104877 : f32
    %147 = vector.broadcast %cst_57 : f32 to vector<1x128xf32>
    %148 = arith.mulf %147, %143 : vector<1x128xf32>
    %149 = arith.addf %135, %148 : vector<1x128xf32>
    %cst_58 = arith.constant 0.553104877 : f32
    %150 = vector.broadcast %cst_58 : f32 to vector<1x128xf32>
    %151 = arith.mulf %150, %146 : vector<1x128xf32>
    %152 = arith.addf %138, %151 : vector<1x128xf32>
    %cst_59 = arith.constant 1.73670852 : f32
    %153 = vector.broadcast %cst_59 : f32 to vector<1x128xf32>
    %154 = arith.mulf %153, %143 : vector<1x128xf32>
    %155 = arith.addf %123, %154 : vector<1x128xf32>
    %cst_60 = arith.constant 1.73670852 : f32
    %156 = vector.broadcast %cst_60 : f32 to vector<1x128xf32>
    %157 = arith.mulf %156, %146 : vector<1x128xf32>
    %158 = arith.addf %126, %157 : vector<1x128xf32>
    %159 = vector.shape_cast %149 : vector<1x128xf32> to vector<1x1x128xf32>
    %160 = vector.shape_cast %152 : vector<1x128xf32> to vector<1x1x128xf32>
    %161 = tpu.concatenate %159, %160 in 0 : vector<1x1x128xf32>, vector<1x1x128xf32> -> vector<2x1x128xf32>
    %c4_61 = arith.constant 4 : index
    %c0_62 = arith.constant 0 : index
    %c0_63 = arith.constant 0 : index
    %c0_64 = arith.constant 0 : index
    %162 = vector.load %arg2[%c4_61, %c0_62, %c0_63, %c0_64] : memref<14x2x1x128xf32, #tpu.memory_space<vmem>>, vector<1x2x1x128xf32>
    %163 = vector.shape_cast %162 : vector<1x2x1x128xf32> to vector<2x1x128xf32>
    %164 = vector.shape_cast %161 : vector<2x1x128xf32> to vector<1x2x1x128xf32>
    tpu.vector_store %arg2[%c4_61, %c0_62, %c0_63, %c0_64], %164 {strides = array<i32>} : memref<14x2x1x128xf32, #tpu.memory_space<vmem>>, vector<1x2x1x128xf32>,
    %cst_65 = arith.constant 1.000000e-01 : f32
    %165 = vector.broadcast %cst_65 : f32 to vector<1x128xf32>
    %166 = arith.mulf %165, %155 : vector<1x128xf32>
    %167 = arith.addf %149, %166 : vector<1x128xf32>
    %cst_66 = arith.constant 1.000000e-01 : f32
    %168 = vector.broadcast %cst_66 : f32 to vector<1x128xf32>
    %169 = arith.mulf %168, %158 : vector<1x128xf32>
    %170 = arith.addf %152, %169 : vector<1x128xf32>
    %c5 = arith.constant 5 : index
    %c0_67 = arith.constant 0 : index
    %c0_68 = arith.constant 0 : index
    %c0_69 = arith.constant 0 : index
    %171 = vector.load %arg1[%c5, %c0_67, %c0_68, %c0_69] : memref<8x2x1x128xf32, #tpu.memory_space<vmem>>, vector<1x2x1x128xf32>
    %172 = vector.shape_cast %171 : vector<1x2x1x128xf32> to vector<2x1x128xf32>
    %173 = vector.extract_strided_slice %172 {offsets = [0, 0, 0], sizes = [1, 1, 128], strides = [1, 1, 1]} : vector<2x1x128xf32> to vector<1x1x128xf32>
    %174 = vector.shape_cast %173 : vector<1x1x128xf32> to vector<1x128xf32>
    %175 = arith.subf %174, %167 : vector<1x128xf32>
    %176 = vector.extract_strided_slice %172 {offsets = [1, 0, 0], sizes = [1, 1, 128], strides = [1, 1, 1]} : vector<2x1x128xf32> to vector<1x1x128xf32>
    %177 = vector.shape_cast %176 : vector<1x1x128xf32> to vector<1x128xf32>
    %178 = arith.subf %177, %170 : vector<1x128xf32>
    %cst_70 = arith.constant 0.496350199 : f32
    %179 = vector.broadcast %cst_70 : f32 to vector<1x128xf32>
    %180 = arith.mulf %179, %175 : vector<1x128xf32>
    %181 = arith.addf %167, %180 : vector<1x128xf32>
    %cst_71 = arith.constant 0.496350199 : f32
    %182 = vector.broadcast %cst_71 : f32 to vector<1x128xf32>
    %183 = arith.mulf %182, %178 : vector<1x128xf32>
    %184 = arith.addf %170, %183 : vector<1x128xf32>
    %cst_72 = arith.constant 1.30372679 : f32
    %185 = vector.broadcast %cst_72 : f32 to vector<1x128xf32>
    %186 = arith.mulf %185, %175 : vector<1x128xf32>
    %187 = arith.addf %155, %186 : vector<1x128xf32>
    %cst_73 = arith.constant 1.30372679 : f32
    %188 = vector.broadcast %cst_73 : f32 to vector<1x128xf32>
    %189 = arith.mulf %188, %178 : vector<1x128xf32>
    %190 = arith.addf %158, %189 : vector<1x128xf32>
    %191 = vector.shape_cast %181 : vector<1x128xf32> to vector<1x1x128xf32>
    %192 = vector.shape_cast %184 : vector<1x128xf32> to vector<1x1x128xf32>
    %193 = tpu.concatenate %191, %192 in 0 : vector<1x1x128xf32>, vector<1x1x128xf32> -> vector<2x1x128xf32>
    %c5_74 = arith.constant 5 : index
    %c0_75 = arith.constant 0 : index
    %c0_76 = arith.constant 0 : index
    %c0_77 = arith.constant 0 : index
    %194 = vector.load %arg2[%c5_74, %c0_75, %c0_76, %c0_77] : memref<14x2x1x128xf32, #tpu.memory_space<vmem>>, vector<1x2x1x128xf32>
    %195 = vector.shape_cast %194 : vector<1x2x1x128xf32> to vector<2x1x128xf32>
    %196 = vector.shape_cast %193 : vector<2x1x128xf32> to vector<1x2x1x128xf32>
    tpu.vector_store %arg2[%c5_74, %c0_75, %c0_76, %c0_77], %196 {strides = array<i32>} : memref<14x2x1x128xf32, #tpu.memory_space<vmem>>, vector<1x2x1x128xf32>,
    %cst_78 = arith.constant 1.000000e-01 : f32
    %197 = vector.broadcast %cst_78 : f32 to vector<1x128xf32>
    %198 = arith.mulf %197, %187 : vector<1x128xf32>
    %199 = arith.addf %181, %198 : vector<1x128xf32>
    %cst_79 = arith.constant 1.000000e-01 : f32
    %200 = vector.broadcast %cst_79 : f32 to vector<1x128xf32>
    %201 = arith.mulf %200, %190 : vector<1x128xf32>
    %202 = arith.addf %184, %201 : vector<1x128xf32>
    %c6 = arith.constant 6 : index
    %c0_80 = arith.constant 0 : index
    %c0_81 = arith.constant 0 : index
    %c0_82 = arith.constant 0 : index
    %203 = vector.load %arg1[%c6, %c0_80, %c0_81, %c0_82] : memref<8x2x1x128xf32, #tpu.memory_space<vmem>>, vector<1x2x1x128xf32>
    %204 = vector.shape_cast %203 : vector<1x2x1x128xf32> to vector<2x1x128xf32>
    %205 = vector.extract_strided_slice %204 {offsets = [0, 0, 0], sizes = [1, 1, 128], strides = [1, 1, 1]} : vector<2x1x128xf32> to vector<1x1x128xf32>
    %206 = vector.shape_cast %205 : vector<1x1x128xf32> to vector<1x128xf32>
    %207 = arith.subf %206, %199 : vector<1x128xf32>
    %208 = vector.extract_strided_slice %204 {offsets = [1, 0, 0], sizes = [1, 1, 128], strides = [1, 1, 1]} : vector<2x1x128xf32> to vector<1x1x128xf32>
    %209 = vector.shape_cast %208 : vector<1x1x128xf32> to vector<1x128xf32>
    %210 = arith.subf %209, %202 : vector<1x128xf32>
    %cst_83 = arith.constant 0.447180212 : f32
    %211 = vector.broadcast %cst_83 : f32 to vector<1x128xf32>
    %212 = arith.mulf %211, %207 : vector<1x128xf32>
    %213 = arith.addf %199, %212 : vector<1x128xf32>
    %cst_84 = arith.constant 0.447180212 : f32
    %214 = vector.broadcast %cst_84 : f32 to vector<1x128xf32>
    %215 = arith.mulf %214, %210 : vector<1x128xf32>
    %216 = arith.addf %202, %215 : vector<1x128xf32>
    %cst_85 = arith.constant 1.00784516 : f32
    %217 = vector.broadcast %cst_85 : f32 to vector<1x128xf32>
    %218 = arith.mulf %217, %207 : vector<1x128xf32>
    %219 = arith.addf %187, %218 : vector<1x128xf32>
    %cst_86 = arith.constant 1.00784516 : f32
    %220 = vector.broadcast %cst_86 : f32 to vector<1x128xf32>
    %221 = arith.mulf %220, %210 : vector<1x128xf32>
    %222 = arith.addf %190, %221 : vector<1x128xf32>
    %223 = vector.shape_cast %213 : vector<1x128xf32> to vector<1x1x128xf32>
    %224 = vector.shape_cast %216 : vector<1x128xf32> to vector<1x1x128xf32>
    %225 = tpu.concatenate %223, %224 in 0 : vector<1x1x128xf32>, vector<1x1x128xf32> -> vector<2x1x128xf32>
    %c6_87 = arith.constant 6 : index
    %c0_88 = arith.constant 0 : index
    %c0_89 = arith.constant 0 : index
    %c0_90 = arith.constant 0 : index
    %226 = vector.load %arg2[%c6_87, %c0_88, %c0_89, %c0_90] : memref<14x2x1x128xf32, #tpu.memory_space<vmem>>, vector<1x2x1x128xf32>
    %227 = vector.shape_cast %226 : vector<1x2x1x128xf32> to vector<2x1x128xf32>
    %228 = vector.shape_cast %225 : vector<2x1x128xf32> to vector<1x2x1x128xf32>
    tpu.vector_store %arg2[%c6_87, %c0_88, %c0_89, %c0_90], %228 {strides = array<i32>} : memref<14x2x1x128xf32, #tpu.memory_space<vmem>>, vector<1x2x1x128xf32>,
    %cst_91 = arith.constant 1.000000e-01 : f32
    %229 = vector.broadcast %cst_91 : f32 to vector<1x128xf32>
    %230 = arith.mulf %229, %219 : vector<1x128xf32>
    %231 = arith.addf %213, %230 : vector<1x128xf32>
    %cst_92 = arith.constant 1.000000e-01 : f32
    %232 = vector.broadcast %cst_92 : f32 to vector<1x128xf32>
    %233 = arith.mulf %232, %222 : vector<1x128xf32>
    %234 = arith.addf %216, %233 : vector<1x128xf32>
    %c7 = arith.constant 7 : index
    %c0_93 = arith.constant 0 : index
    %c0_94 = arith.constant 0 : index
    %c0_95 = arith.constant 0 : index
    %235 = vector.load %arg1[%c7, %c0_93, %c0_94, %c0_95] : memref<8x2x1x128xf32, #tpu.memory_space<vmem>>, vector<1x2x1x128xf32>
    %236 = vector.shape_cast %235 : vector<1x2x1x128xf32> to vector<2x1x128xf32>
    %237 = vector.extract_strided_slice %236 {offsets = [0, 0, 0], sizes = [1, 1, 128], strides = [1, 1, 1]} : vector<2x1x128xf32> to vector<1x1x128xf32>
    %238 = vector.shape_cast %237 : vector<1x1x128xf32> to vector<1x128xf32>
    %239 = arith.subf %238, %231 : vector<1x128xf32>
    %240 = vector.extract_strided_slice %236 {offsets = [1, 0, 0], sizes = [1, 1, 128], strides = [1, 1, 1]} : vector<2x1x128xf32> to vector<1x1x128xf32>
    %241 = vector.shape_cast %240 : vector<1x1x128xf32> to vector<1x128xf32>
    %242 = arith.subf %241, %234 : vector<1x128xf32>
    %cst_96 = arith.constant 0.405712575 : f32
    %243 = vector.broadcast %cst_96 : f32 to vector<1x128xf32>
    %244 = arith.mulf %243, %239 : vector<1x128xf32>
    %245 = arith.addf %231, %244 : vector<1x128xf32>
    %cst_97 = arith.constant 0.405712575 : f32
    %246 = vector.broadcast %cst_97 : f32 to vector<1x128xf32>
    %247 = arith.mulf %246, %242 : vector<1x128xf32>
    %248 = arith.addf %234, %247 : vector<1x128xf32>
    %cst_98 = arith.constant 0.801383078 : f32
    %249 = vector.broadcast %cst_98 : f32 to vector<1x128xf32>
    %250 = arith.mulf %249, %239 : vector<1x128xf32>
    %251 = arith.addf %219, %250 : vector<1x128xf32>
    %cst_99 = arith.constant 0.801383078 : f32
    %252 = vector.broadcast %cst_99 : f32 to vector<1x128xf32>
    %253 = arith.mulf %252, %242 : vector<1x128xf32>
    %254 = arith.addf %222, %253 : vector<1x128xf32>
    %255 = vector.shape_cast %245 : vector<1x128xf32> to vector<1x1x128xf32>
    %256 = vector.shape_cast %248 : vector<1x128xf32> to vector<1x1x128xf32>
    %257 = tpu.concatenate %255, %256 in 0 : vector<1x1x128xf32>, vector<1x1x128xf32> -> vector<2x1x128xf32>
    %c7_100 = arith.constant 7 : index
    %c0_101 = arith.constant 0 : index
    %c0_102 = arith.constant 0 : index
    %c0_103 = arith.constant 0 : index
    %258 = vector.load %arg2[%c7_100, %c0_101, %c0_102, %c0_103] : memref<14x2x1x128xf32, #tpu.memory_space<vmem>>, vector<1x2x1x128xf32>
    %259 = vector.shape_cast %258 : vector<1x2x1x128xf32> to vector<2x1x128xf32>
    %260 = vector.shape_cast %257 : vector<2x1x128xf32> to vector<1x2x1x128xf32>
    tpu.vector_store %arg2[%c7_100, %c0_101, %c0_102, %c0_103], %260 {strides = array<i32>} : memref<14x2x1x128xf32, #tpu.memory_space<vmem>>, vector<1x2x1x128xf32>,
    %cst_104 = arith.constant 1.000000e-01 : f32
    %261 = vector.broadcast %cst_104 : f32 to vector<1x128xf32>
    %262 = arith.mulf %261, %251 : vector<1x128xf32>
    %263 = arith.addf %245, %262 : vector<1x128xf32>
    %cst_105 = arith.constant 1.000000e-01 : f32
    %264 = vector.broadcast %cst_105 : f32 to vector<1x128xf32>
    %265 = arith.mulf %264, %254 : vector<1x128xf32>
    %266 = arith.addf %248, %265 : vector<1x128xf32>
    %267 = vector.shape_cast %263 : vector<1x128xf32> to vector<1x1x128xf32>
    %268 = vector.shape_cast %266 : vector<1x128xf32> to vector<1x1x128xf32>
    %269 = tpu.concatenate %267, %268 in 0 : vector<1x1x128xf32>, vector<1x1x128xf32> -> vector<2x1x128xf32>
    %c8 = arith.constant 8 : index
    %c0_106 = arith.constant 0 : index
    %c0_107 = arith.constant 0 : index
    %c0_108 = arith.constant 0 : index
    %270 = vector.load %arg2[%c8, %c0_106, %c0_107, %c0_108] : memref<14x2x1x128xf32, #tpu.memory_space<vmem>>, vector<1x2x1x128xf32>
    %271 = vector.shape_cast %270 : vector<1x2x1x128xf32> to vector<2x1x128xf32>
    %272 = vector.shape_cast %269 : vector<2x1x128xf32> to vector<1x2x1x128xf32>
    tpu.vector_store %arg2[%c8, %c0_106, %c0_107, %c0_108], %272 {strides = array<i32>} : memref<14x2x1x128xf32, #tpu.memory_space<vmem>>, vector<1x2x1x128xf32>,
    %cst_109 = arith.constant 1.000000e-01 : f32
    %273 = vector.broadcast %cst_109 : f32 to vector<1x128xf32>
    %274 = arith.mulf %273, %251 : vector<1x128xf32>
    %275 = arith.addf %263, %274 : vector<1x128xf32>
    %cst_110 = arith.constant 1.000000e-01 : f32
    %276 = vector.broadcast %cst_110 : f32 to vector<1x128xf32>
    %277 = arith.mulf %276, %254 : vector<1x128xf32>
    %278 = arith.addf %266, %277 : vector<1x128xf32>
    %279 = vector.shape_cast %275 : vector<1x128xf32> to vector<1x1x128xf32>
    %280 = vector.shape_cast %278 : vector<1x128xf32> to vector<1x1x128xf32>
    %281 = tpu.concatenate %279, %280 in 0 : vector<1x1x128xf32>, vector<1x1x128xf32> -> vector<2x1x128xf32>
    %c9 = arith.constant 9 : index
    %c0_111 = arith.constant 0 : index
    %c0_112 = arith.constant 0 : index
    %c0_113 = arith.constant 0 : index
    %282 = vector.load %arg2[%c9, %c0_111, %c0_112, %c0_113] : memref<14x2x1x128xf32, #tpu.memory_space<vmem>>, vector<1x2x1x128xf32>
    %283 = vector.shape_cast %282 : vector<1x2x1x128xf32> to vector<2x1x128xf32>
    %284 = vector.shape_cast %281 : vector<2x1x128xf32> to vector<1x2x1x128xf32>
    tpu.vector_store %arg2[%c9, %c0_111, %c0_112, %c0_113], %284 {strides = array<i32>} : memref<14x2x1x128xf32, #tpu.memory_space<vmem>>, vector<1x2x1x128xf32>,
    %cst_114 = arith.constant 1.000000e-01 : f32
    %285 = vector.broadcast %cst_114 : f32 to vector<1x128xf32>
    %286 = arith.mulf %285, %251 : vector<1x128xf32>
    %287 = arith.addf %275, %286 : vector<1x128xf32>
    %cst_115 = arith.constant 1.000000e-01 : f32
    %288 = vector.broadcast %cst_115 : f32 to vector<1x128xf32>
    %289 = arith.mulf %288, %254 : vector<1x128xf32>
    %290 = arith.addf %278, %289 : vector<1x128xf32>
    %291 = vector.shape_cast %287 : vector<1x128xf32> to vector<1x1x128xf32>
    %292 = vector.shape_cast %290 : vector<1x128xf32> to vector<1x1x128xf32>
    %293 = tpu.concatenate %291, %292 in 0 : vector<1x1x128xf32>, vector<1x1x128xf32> -> vector<2x1x128xf32>
    %c10 = arith.constant 10 : index
    %c0_116 = arith.constant 0 : index
    %c0_117 = arith.constant 0 : index
    %c0_118 = arith.constant 0 : index
    %294 = vector.load %arg2[%c10, %c0_116, %c0_117, %c0_118] : memref<14x2x1x128xf32, #tpu.memory_space<vmem>>, vector<1x2x1x128xf32>
    %295 = vector.shape_cast %294 : vector<1x2x1x128xf32> to vector<2x1x128xf32>
    %296 = vector.shape_cast %293 : vector<2x1x128xf32> to vector<1x2x1x128xf32>
    tpu.vector_store %arg2[%c10, %c0_116, %c0_117, %c0_118], %296 {strides = array<i32>} : memref<14x2x1x128xf32, #tpu.memory_space<vmem>>, vector<1x2x1x128xf32>,
    %cst_119 = arith.constant 1.000000e-01 : f32
    %297 = vector.broadcast %cst_119 : f32 to vector<1x128xf32>
    %298 = arith.mulf %297, %251 : vector<1x128xf32>
    %299 = arith.addf %287, %298 : vector<1x128xf32>
    %cst_120 = arith.constant 1.000000e-01 : f32
    %300 = vector.broadcast %cst_120 : f32 to vector<1x128xf32>
    %301 = arith.mulf %300, %254 : vector<1x128xf32>
    %302 = arith.addf %290, %301 : vector<1x128xf32>
    %303 = vector.shape_cast %299 : vector<1x128xf32> to vector<1x1x128xf32>
    %304 = vector.shape_cast %302 : vector<1x128xf32> to vector<1x1x128xf32>
    %305 = tpu.concatenate %303, %304 in 0 : vector<1x1x128xf32>, vector<1x1x128xf32> -> vector<2x1x128xf32>
    %c11 = arith.constant 11 : index
    %c0_121 = arith.constant 0 : index
    %c0_122 = arith.constant 0 : index
    %c0_123 = arith.constant 0 : index
    %306 = vector.load %arg2[%c11, %c0_121, %c0_122, %c0_123] : memref<14x2x1x128xf32, #tpu.memory_space<vmem>>, vector<1x2x1x128xf32>
    %307 = vector.shape_cast %306 : vector<1x2x1x128xf32> to vector<2x1x128xf32>
    %308 = vector.shape_cast %305 : vector<2x1x128xf32> to vector<1x2x1x128xf32>
    tpu.vector_store %arg2[%c11, %c0_121, %c0_122, %c0_123], %308 {strides = array<i32>} : memref<14x2x1x128xf32, #tpu.memory_space<vmem>>, vector<1x2x1x128xf32>,
    %cst_124 = arith.constant 1.000000e-01 : f32
    %309 = vector.broadcast %cst_124 : f32 to vector<1x128xf32>
    %310 = arith.mulf %309, %251 : vector<1x128xf32>
    %311 = arith.addf %299, %310 : vector<1x128xf32>
    %cst_125 = arith.constant 1.000000e-01 : f32
    %312 = vector.broadcast %cst_125 : f32 to vector<1x128xf32>
    %313 = arith.mulf %312, %254 : vector<1x128xf32>
    %314 = arith.addf %302, %313 : vector<1x128xf32>
    %315 = vector.shape_cast %311 : vector<1x128xf32> to vector<1x1x128xf32>
    %316 = vector.shape_cast %314 : vector<1x128xf32> to vector<1x1x128xf32>
    %317 = tpu.concatenate %315, %316 in 0 : vector<1x1x128xf32>, vector<1x1x128xf32> -> vector<2x1x128xf32>
    %c12 = arith.constant 12 : index
    %c0_126 = arith.constant 0 : index
    %c0_127 = arith.constant 0 : index
    %c0_128 = arith.constant 0 : index
    %318 = vector.load %arg2[%c12, %c0_126, %c0_127, %c0_128] : memref<14x2x1x128xf32, #tpu.memory_space<vmem>>, vector<1x2x1x128xf32>
    %319 = vector.shape_cast %318 : vector<1x2x1x128xf32> to vector<2x1x128xf32>
    %320 = vector.shape_cast %317 : vector<2x1x128xf32> to vector<1x2x1x128xf32>
    tpu.vector_store %arg2[%c12, %c0_126, %c0_127, %c0_128], %320 {strides = array<i32>} : memref<14x2x1x128xf32, #tpu.memory_space<vmem>>, vector<1x2x1x128xf32>,
    %cst_129 = arith.constant 1.000000e-01 : f32
    %321 = vector.broadcast %cst_129 : f32 to vector<1x128xf32>
    %322 = arith.mulf %321, %251 : vector<1x128xf32>
    %323 = arith.addf %311, %322 : vector<1x128xf32>
    %cst_130 = arith.constant 1.000000e-01 : f32
    %324 = vector.broadcast %cst_130 : f32 to vector<1x128xf32>
    %325 = arith.mulf %324, %254 : vector<1x128xf32>
    %326 = arith.addf %314, %325 : vector<1x128xf32>
    %327 = vector.shape_cast %323 : vector<1x128xf32> to vector<1x1x128xf32>
    %328 = vector.shape_cast %326 : vector<1x128xf32> to vector<1x1x128xf32>
    %329 = tpu.concatenate %327, %328 in 0 : vector<1x1x128xf32>, vector<1x1x128xf32> -> vector<2x1x128xf32>
    %c13 = arith.constant 13 : index
    %c0_131 = arith.constant 0 : index
    %c0_132 = arith.constant 0 : index
    %c0_133 = arith.constant 0 : index
    %330 = vector.load %arg2[%c13, %c0_131, %c0_132, %c0_133] : memref<14x2x1x128xf32, #tpu.memory_space<vmem>>, vector<1x2x1x128xf32>
    %331 = vector.shape_cast %330 : vector<1x2x1x128xf32> to vector<2x1x128xf32>
    %332 = vector.shape_cast %329 : vector<2x1x128xf32> to vector<1x2x1x128xf32>
    tpu.vector_store %arg2[%c13, %c0_131, %c0_132, %c0_133], %332 {strides = array<i32>} : memref<14x2x1x128xf32, #tpu.memory_space<vmem>>, vector<1x2x1x128xf32>,
    return
  }
  func.func @transform_0(%arg0: i32) -> (i32, i32, i32, i32) {
    %c0_i32 = arith.constant 0 : i32
    %c0_i32_0 = arith.constant 0 : i32
    %c0_i32_1 = arith.constant 0 : i32
    %c0_i32_2 = arith.constant 0 : i32
    return %c0_i32, %c0_i32_0, %arg0, %c0_i32_1 : i32, i32, i32, i32
  }
  func.func @transform_1(%arg0: i32) -> (i32, i32, i32, i32) {
    %c0_i32 = arith.constant 0 : i32
    %c0_i32_0 = arith.constant 0 : i32
    %c0_i32_1 = arith.constant 0 : i32
    %c0_i32_2 = arith.constant 0 : i32
    return %c0_i32, %c0_i32_0, %arg0, %c0_i32_1 : i32, i32, i32, i32
  }
}

</mosaic_0001>

<llo_original>
// kernel: tpu_custom_call.1
$region0: #{tpu_custom_call.1}
  #allocation0 [shape = 'u32[]', space=smem, size = 0x4, offset = 0x4, fixed_abs, tag = 'smem constant byte address 0x4 - core index']
  #allocation1 [shape = 'u32[144,128]{1,0:T(1,128)}', space=vmem, size = 0x12000, scoped, tag = 'internal scratch']
  %s0 = inlined_call_operand.hbm [shape: f32[8,2,1,128], index: 0, kind: input, shape index: {}]
  %s1 = inlined_call_operand.hbm [shape: f32[14,2,1,128], index: 1, kind: output, shape index: {}]
  %s2 = sld [smem:[#allocation0]]
  $region18: #{tpu_custom_call.1} parent=0
    _
  %s4 = ssub.s32 1, %s2
  %s5 = scalar_select 0, %s4, %s2
  $region1: #{tpu_custom_call.1} parent=0
    #allocation2 [shape = 'u8[8192]{0}', space=vmem, size = 0x2000, scoped, tag = 'input window, operand 0, single buffered']
    #allocation3 [shape = 's32[1]{0}', space=sflag, size = 0x4, scoped, tag = 'scoped memory for tpu_custom_call.1']
    #allocation4 [shape = 's32[1]{0}', space=sflag, size = 0x4, scoped, tag = 'scoped memory for tpu_custom_call.1']
    #allocation5 [shape = 'u8[14336]{0}', space=vmem, size = 0x3800, scoped, tag = 'output window, operand 0, single buffered']
    %6 = vsyncpa [#allocation3], 0
    %7 = vsyncpa [#allocation4], 0
    // Predicated region
    $region2: #{tpu_custom_call.1} parent=1 // pred_check
      _
    $region3: #{tpu_custom_call.1} parent=1 // pred_check_branch
      %9 = sbr.rel (0) target = $region5
    $region4: #{tpu_custom_call.1} parent=1 // pred_region
      %s11 = ssub.s32 256, 256
      %12 = vsyncadd [#allocation3], %s11
      %s13 = sshll.u32 [#allocation2], 4
      %s14 = int_to_ptr.vmem [resolvable:$true] %s13
      %19 = dma.hbm_to_vmem [thread:$0]  %s0, 256, %s14, [#allocation3], 16, 16, 1
    $region5: #{tpu_custom_call.1} parent=1 // pred_fallthru
      _
    // Predicated region
    $region6: #{tpu_custom_call.1} parent=1 // pred_check
      _
    $region7: #{tpu_custom_call.1} parent=1 // pred_check_branch
      %21 = sbr.rel (0) target = $region9
    $region8: #{tpu_custom_call.1} parent=1 // pred_region
      %22 = dma.done [#allocation3], 256
    $region9: #{tpu_custom_call.1} parent=1 // pred_fallthru
      _
    %v23 = vld [vmem:[#allocation2] sm:$0x1]
    %v24 = vld [vmem:[#allocation2 + $0x1] sm:$0x1]
    %v25 = vadd.f32 %v23, 0.0
    %v26 = vadd.f32 %v24, 0.0
    %v27 = vsub.f32 %v23, %v25
    %v28 = vsub.f32 %v24, %v26
    %v29 = vmul.f32 %v27, 0.9166675
    %v30 = vadd.f32 %v25, %v29
    %v31 = vmul.f32 %v28, 0.9166675
    %v32 = vadd.f32 %v26, %v31
    %v33 = vmul.f32 %v27, 0.833533
    %v34 = vadd.f32 %v33, 0.0
    %v35 = vmul.f32 %v28, 0.833533
    %v36 = vadd.f32 %v35, 0.0
    %37 = vst [vmem:[#allocation5] sm:$0x1] %v30
    %38 = vst [vmem:[#allocation5 + $0x1] sm:$0x1] %v32
    %v39 = vmul.f32 %v34, 0.1
    %v40 = vadd.f32 %v30, %v39
    %v41 = vmul.f32 %v36, 0.1
    %v42 = vadd.f32 %v32, %v41
    %s43 = scalar_lea.vmem [#allocation2], 2
    %v44 = vld [vmem:[%s43] sm:$0x1]
    %v45 = vld [vmem:[%s43 + $0x1] sm:$0x1]
    %v46 = vsub.f32 %v44, %v40
    %v47 = vsub.f32 %v45, %v42
    %v48 = vmul.f32 %v46, 0.66673607
    %v49 = vadd.f32 %v40, %v48
    %v50 = vmul.f32 %v47, 0.66673607
    %v51 = vadd.f32 %v42, %v50
    %v52 = vmul.f32 %v46, 3.3350692
    %v53 = vadd.f32 %v34, %v52
    %v54 = vmul.f32 %v47, 3.3350692
    %v55 = vadd.f32 %v36, %v54
    %s56 = scalar_lea.vmem [#allocation5], 2
    %57 = vst [vmem:[%s56] sm:$0x1] %v49
    %58 = vst [vmem:[%s56 + $0x1] sm:$0x1] %v51
    %v59 = vmul.f32 %v53, 0.1
    %v60 = vadd.f32 %v49, %v59
    %v61 = vmul.f32 %v55, 0.1
    %v62 = vadd.f32 %v51, %v61
    %s63 = scalar_lea.vmem [#allocation2], 4
    %v64 = vld [vmem:[%s63] sm:$0x1]
    %v65 = vld [vmem:[%s63 + $0x1] sm:$0x1]
    %v66 = vsub.f32 %v64, %v60
    %v67 = vsub.f32 %v65, %v62
    %v68 = vmul.f32 %v66, 0.65727025
    %v69 = vadd.f32 %v60, %v68
    %v70 = vmul.f32 %v67, 0.65727025
    %v71 = vadd.f32 %v62, %v70
    %v72 = vmul.f32 %v66, 3.1450002
    %v73 = vadd.f32 %v53, %v72
    %v74 = vmul.f32 %v67, 3.1450002
    %v75 = vadd.f32 %v55, %v74
    %s76 = scalar_lea.vmem [#allocation5], 4
    %77 = vst [vmem:[%s76] sm:$0x1] %v69
    %78 = vst [vmem:[%s76 + $0x1] sm:$0x1] %v71
    %v79 = vmul.f32 %v73, 0.1
    %v80 = vadd.f32 %v69, %v79
    %v81 = vmul.f32 %v75, 0.1
    %v82 = vadd.f32 %v71, %v81
    %s83 = scalar_lea.vmem [#allocation2], 6
    %v84 = vld [vmem:[%s83] sm:$0x1]
    %v85 = vld [vmem:[%s83 + $0x1] sm:$0x1]
    %v86 = vsub.f32 %v84, %v80
    %v87 = vsub.f32 %v85, %v82
    %v88 = vmul.f32 %v86, 0.61272967
    %v89 = vadd.f32 %v80, %v88
    %v90 = vmul.f32 %v87, 0.61272967
    %v91 = vadd.f32 %v82, %v90
    %v92 = vmul.f32 %v86, 2.3644028
    %v93 = vadd.f32 %v73, %v92
    %v94 = vmul.f32 %v87, 2.3644028
    %v95 = vadd.f32 %v75, %v94
    %s96 = scalar_lea.vmem [#allocation5], 6
    %97 = vst [vmem:[%s96] sm:$0x1] %v89
    %98 = vst [vmem:[%s96 + $0x1] sm:$0x1] %v91
    %v99 = vmul.f32 %v93, 0.1
    %v100 = vadd.f32 %v89, %v99
    %v101 = vmul.f32 %v95, 0.1
    %v102 = vadd.f32 %v91, %v101
    %s103 = scalar_lea.vmem [#allocation2], 8
    %v104 = vld [vmem:[%s103] sm:$0x1]
    %v105 = vld [vmem:[%s103 + $0x1] sm:$0x1]
    %v106 = vsub.f32 %v104, %v100
    %v107 = vsub.f32 %v105, %v102
    %v108 = vmul.f32 %v106, 0.5531049
    %v109 = vadd.f32 %v100, %v108
    %v110 = vmul.f32 %v107, 0.5531049
    %v111 = vadd.f32 %v102, %v110
    %v112 = vmul.f32 %v106, 1.7367085
    %v113 = vadd.f32 %v93, %v112
    %v114 = vmul.f32 %v107, 1.7367085
    %v115 = vadd.f32 %v95, %v114
    %s116 = scalar_lea.vmem [#allocation5], 8
    %117 = vst [vmem:[%s116] sm:$0x1] %v109
    %118 = vst [vmem:[%s116 + $0x1] sm:$0x1] %v111
    %v119 = vmul.f32 %v113, 0.1
    %v120 = vadd.f32 %v109, %v119
    %v121 = vmul.f32 %v115, 0.1
    %v122 = vadd.f32 %v111, %v121
    %s123 = scalar_lea.vmem [#allocation2], 10
    %v124 = vld [vmem:[%s123] sm:$0x1]
    %v125 = vld [vmem:[%s123 + $0x1] sm:$0x1]
    %v126 = vsub.f32 %v124, %v120
    %v127 = vsub.f32 %v125, %v122
    %v128 = vmul.f32 %v126, 0.4963502
    %v129 = vadd.f32 %v120, %v128
    %v130 = vmul.f32 %v127, 0.4963502
    %v131 = vadd.f32 %v122, %v130
    %v132 = vmul.f32 %v126, 1.3037268
    %v133 = vadd.f32 %v113, %v132
    %v134 = vmul.f32 %v127, 1.3037268
    %v135 = vadd.f32 %v115, %v134
    %s136 = scalar_lea.vmem [#allocation5], 10
    %137 = vst [vmem:[%s136] sm:$0x1] %v129
    %138 = vst [vmem:[%s136 + $0x1] sm:$0x1] %v131
    %v139 = vmul.f32 %v133, 0.1
    %v140 = vadd.f32 %v129, %v139
    %v141 = vmul.f32 %v135, 0.1
    %v142 = vadd.f32 %v131, %v141
    %s143 = scalar_lea.vmem [#allocation2], 12
    %v144 = vld [vmem:[%s143] sm:$0x1]
    %v145 = vld [vmem:[%s143 + $0x1] sm:$0x1]
    %v146 = vsub.f32 %v144, %v140
    %v147 = vsub.f32 %v145, %v142
    %v148 = vmul.f32 %v146, 0.4471802
    %v149 = vadd.f32 %v140, %v148
    %v150 = vmul.f32 %v147, 0.4471802
    %v151 = vadd.f32 %v142, %v150
    %v152 = vmul.f32 %v146, 1.0078452
    %v153 = vadd.f32 %v133, %v152
    %v154 = vmul.f32 %v147, 1.0078452
    %v155 = vadd.f32 %v135, %v154
    %s156 = scalar_lea.vmem [#allocation5], 12
    %157 = vst [vmem:[%s156] sm:$0x1] %v149
    %158 = vst [vmem:[%s156 + $0x1] sm:$0x1] %v151
    %v159 = vmul.f32 %v153, 0.1
    %v160 = vadd.f32 %v149, %v159
    %v161 = vmul.f32 %v155, 0.1
    %v162 = vadd.f32 %v151, %v161
    %s163 = scalar_lea.vmem [#allocation2], 14
    %v164 = vld [vmem:[%s163] sm:$0x1]
    %v165 = vld [vmem:[%s163 + $0x1] sm:$0x1]
    %v166 = vsub.f32 %v164, %v160
    %v167 = vsub.f32 %v165, %v162
    %v168 = vmul.f32 %v166, 0.40571257
    %v169 = vadd.f32 %v160, %v168
    %v170 = vmul.f32 %v167, 0.40571257
    %v171 = vadd.f32 %v162, %v170
    %v172 = vmul.f32 %v166, 0.8013831
    %v173 = vadd.f32 %v153, %v172
    %v174 = vmul.f32 %v167, 0.8013831
    %v175 = vadd.f32 %v155, %v174
    %s176 = scalar_lea.vmem [#allocation5], 14
    %177 = vst [vmem:[%s176] sm:$0x1] %v169
    %178 = vst [vmem:[%s176 + $0x1] sm:$0x1] %v171
    %v179 = vmul.f32 %v173, 0.1
    %v180 = vadd.f32 %v169, %v179
    %v181 = vmul.f32 %v175, 0.1
    %v182 = vadd.f32 %v171, %v181
    %s183 = scalar_lea.vmem [#allocation5], 16
    %184 = vst [vmem:[%s183] sm:$0x1] %v180
    %185 = vst [vmem:[%s183 + $0x1] sm:$0x1] %v182
    %v186 = vadd.f32 %v180, %v179
    %v187 = vadd.f32 %v182, %v181
    %s188 = scalar_lea.vmem [#allocation5], 18
    %189 = vst [vmem:[%s188] sm:$0x1] %v186
    %190 = vst [vmem:[%s188 + $0x1] sm:$0x1] %v187
    %v191 = vadd.f32 %v186, %v179
    %v192 = vadd.f32 %v187, %v181
    %s193 = scalar_lea.vmem [#allocation5], 20
    %194 = vst [vmem:[%s193] sm:$0x1] %v191
    %195 = vst [vmem:[%s193 + $0x1] sm:$0x1] %v192
    %v196 = vadd.f32 %v191, %v179
    %v197 = vadd.f32 %v192, %v181
    %s198 = scalar_lea.vmem [#allocation5], 22
    %199 = vst [vmem:[%s198] sm:$0x1] %v196
    %200 = vst [vmem:[%s198 + $0x1] sm:$0x1] %v197
    %v201 = vadd.f32 %v196, %v179
    %v202 = vadd.f32 %v197, %v181
    %s203 = scalar_lea.vmem [#allocation5], 24
    %204 = vst [vmem:[%s203] sm:$0x1] %v201
    %205 = vst [vmem:[%s203 + $0x1] sm:$0x1] %v202
    %v206 = vadd.f32 %v201, %v179
    %v207 = vadd.f32 %v202, %v181
    %s208 = scalar_lea.vmem [#allocation5], 26
    %209 = vst [vmem:[%s208] sm:$0x1] %v206
    %210 = vst [vmem:[%s208 + $0x1] sm:$0x1] %v207
    // Predicated region
    $region10: #{tpu_custom_call.1} parent=1 // pred_check
      _
    $region11: #{tpu_custom_call.1} parent=1 // pred_check_branch
      %212 = sbr.rel (0) target = $region13
    $region12: #{tpu_custom_call.1} parent=1 // pred_region
      %s214 = ssub.s32 448, 448
      %215 = vsyncadd [#allocation4], %s214
      %s216 = sshll.u32 [#allocation5], 4
      %s217 = int_to_ptr.vmem [resolvable:$true] %s216
      %222 = dma.vmem_to_hbm [thread:$0]  %s217, 448, %s1, [#allocation4], 16, 16, 1
    $region13: #{tpu_custom_call.1} parent=1 // pred_fallthru
      _
    // Predicated region
    $region14: #{tpu_custom_call.1} parent=1 // pred_check
      _
    $region15: #{tpu_custom_call.1} parent=1 // pred_check_branch
      %224 = sbr.rel (0) target = $region17
    $region16: #{tpu_custom_call.1} parent=1 // pred_region
      %225 = dma.done [#allocation4], 448
    $region17: #{tpu_custom_call.1} parent=1 // pred_fallthru
      _
    %226 = vsyncpa [#allocation3], 1
    %227 = vsyncpa [#allocation4], 1

</llo_original>
